<compile_context>
chip_gen: v5e
topology: v5e:2x2
jax: 0.10.0
libtpu: 0.0.40
codegen_flags: <defaults>
</compile_context>

<pallas_src>
import functools

import jax
import jax.numpy as jnp
from jax.experimental import pallas as pl
from jax.experimental.pallas import tpu as pltpu

EPS = 1e-3


def _bn_relu_single_kernel(x_ref, gb_ref, o_ref, *, true_l, eps):
    # x_ref:  (C, HW)  one channel per sublane row (true extent, no padding)
    # gb_ref: (C, 2)   column 0 = gamma, column 1 = beta
    x = x_ref[...].astype(jnp.float32)
    inv_l = jnp.float32(1.0 / true_l)

    # Single-pass per-channel statistics (lane reduction is masked to the
    # logical 196-lane extent because the block equals the array shape).
    s = jnp.sum(x, axis=1, keepdims=True)        # (C, 1)
    sq = jnp.sum(x * x, axis=1, keepdims=True)   # (C, 1)
    mean = s * inv_l
    var = sq * inv_l - mean * mean               # biased variance (training-mode BN)
    inv_std = jax.lax.rsqrt(var + eps)

    gb = gb_ref[...].astype(jnp.float32)
    scale = inv_std * gb[:, 0:1]
    shift = gb[:, 1:2] - mean * scale
    y = x * scale + shift
    o_ref[...] = jnp.maximum(y, 0.0).astype(o_ref.dtype)


def _bn_relu_batched_kernel(x_ref, gb_ref, o_ref,
                            sum_sc, sq_sc, scale_sc, shift_sc,
                            *, true_l, eps):
    # grid = (2, N): axis 0 = pass (0: stats, 1: normalize), axis 1 = batch.
    # x_ref / o_ref: (1, C, HW) block for batch n;  gb_ref: (C, 2).
    p = pl.program_id(0)
    n = pl.program_id(1)
    n_total = pl.num_programs(1)

    @pl.when(jnp.logical_and(p == 0, n == 0))
    def _():
        sum_sc[...] = jnp.zeros_like(sum_sc)
        sq_sc[...] = jnp.zeros_like(sq_sc)

    @pl.when(p == 0)
    def _():
        x = x_ref[0].astype(jnp.float32)                      # (C, HW)
        sum_sc[...] += jnp.sum(x, axis=1, keepdims=True)
        sq_sc[...] += jnp.sum(x * x, axis=1, keepdims=True)
        # Output block is revisited on pass 1; write zeros so pass-0 writeback
        # is deterministic (overwritten with real values on pass 1).
        o_ref[...] = jnp.zeros(o_ref.shape, o_ref.dtype)

    @pl.when(jnp.logical_and(p == 0, n == n_total - 1))
    def _():
        inv_l = jnp.float32(1.0 / true_l)
        mean = sum_sc[...] * inv_l
        var = sq_sc[...] * inv_l - mean * mean
        inv_std = jax.lax.rsqrt(var + eps)
        gb = gb_ref[...].astype(jnp.float32)
        scale = inv_std * gb[:, 0:1]
        scale_sc[...] = scale
        shift_sc[...] = gb[:, 1:2] - mean * scale

    @pl.when(p == 1)
    def _():
        x = x_ref[0].astype(jnp.float32)
        y = x * scale_sc[...] + shift_sc[...]
        o_ref[0] = jnp.maximum(y, 0.0).astype(o_ref.dtype)


def batchnorm_relu(x_nchw, gamma, beta, eps=EPS):
    """x_nchw: (N, C, H, W) float32; gamma, beta: (C,) float32."""
    N, C, H, W = x_nchw.shape
    HW = H * W
    L = N * HW

    # Merge affine params into one tiny (C, 2) input -> single parameter DMA.
    gb = jnp.stack([gamma.astype(jnp.float32), beta.astype(jnp.float32)], axis=1)

    if N == 1:
        # Pure reshape (no copy) in and out; single VMEM tile, true lane extent.
        x_cl = x_nchw.reshape(C, HW)
        kernel = functools.partial(_bn_relu_single_kernel, true_l=L, eps=eps)
        cost = pl.CostEstimate(
            flops=7 * C * HW,
            transcendentals=C,
            bytes_accessed=2 * C * HW * 4 + 2 * C * 4,
        )
        out_cl = pl.pallas_call(
            kernel,
            out_shape=jax.ShapeDtypeStruct((C, HW), x_cl.dtype),
            in_specs=[
                pl.BlockSpec((C, HW), lambda: (0, 0)),
                pl.BlockSpec((C, 2), lambda: (0, 0)),
            ],
            out_specs=pl.BlockSpec((C, HW), lambda: (0, 0)),
            cost_estimate=cost,
        )(x_cl, gb)
        return out_cl.reshape(1, C, H, W)

    # N > 1: no HBM transpose. View as (N, C, HW) and walk the batch with a
    # (2, N) grid: pass 0 accumulates stats in VMEM scratch, pass 1 normalizes.
    x_ncl = x_nchw.reshape(N, C, HW)
    kernel = functools.partial(_bn_relu_batched_kernel, true_l=L, eps=eps)
    cost = pl.CostEstimate(
        flops=9 * N * C * HW,
        transcendentals=C,
        bytes_accessed=3 * N * C * HW * 4 + 2 * C * 4,
    )
    out_ncl = pl.pallas_call(
        kernel,
        out_shape=jax.ShapeDtypeStruct((N, C, HW), x_ncl.dtype),
        grid_spec=pltpu.PrefetchScalarGridSpec(
            num_scalar_prefetch=0,
            grid=(2, N),
            in_specs=[
                pl.BlockSpec((1, C, HW), lambda p, n: (n, 0, 0)),
                pl.BlockSpec((C, 2), lambda p, n: (0, 0)),
            ],
            out_specs=pl.BlockSpec((1, C, HW), lambda p, n: (n, 0, 0)),
            scratch_shapes=[
                pltpu.VMEM((C, 1), jnp.float32),   # sum
                pltpu.VMEM((C, 1), jnp.float32),   # sum of squares
                pltpu.VMEM((C, 1), jnp.float32),   # folded scale
                pltpu.VMEM((C, 1), jnp.float32),   # folded shift
            ],
        ),
        compiler_params=pltpu.CompilerParams(
            dimension_semantics=("arbitrary", "arbitrary")),
        cost_estimate=cost,
    )(x_ncl, gb)
    return out_ncl.reshape(N, C, H, W)


def _reference(x_nchw, gamma, beta, eps=EPS):
    mean = jnp.mean(x_nchw, axis=(0, 2, 3), keepdims=True)
    var = jnp.var(x_nchw, axis=(0, 2, 3), keepdims=True)
    y = (x_nchw - mean) / jnp.sqrt(var + eps)
    y = y * gamma.reshape(1, -1, 1, 1) + beta.reshape(1, -1, 1, 1)
    return jnp.maximum(y, 0.0)


if __name__ == "__main__":
    key = jax.random.PRNGKey(0)
    N, C, H, W = 1, 24, 14, 14          # matches torch.Size([1, 24, 14, 14])
    kx, kg, kb, kx2 = jax.random.split(key, 4)
    x = jax.random.normal(kx, (N, C, H, W), dtype=jnp.float32)

    # BatchNorm2d default affine init right after construction: weight=1, bias=0
    gamma = jnp.ones((C,), dtype=jnp.float32)
    beta = jnp.zeros((C,), dtype=jnp.float32)

    out = jax.block_until_ready(batchnorm_relu(x, gamma, beta))
    ref = _reference(x, gamma, beta)
    assert out.shape == (N, C, H, W)
    assert jnp.allclose(out, ref, atol=1e-4, rtol=1e-4)

    # Non-trivial affine params (exercises the folded scale/shift).
    gamma2 = 0.5 + jax.random.uniform(kg, (C,), dtype=jnp.float32)
    beta2 = jax.random.normal(kb, (C,), dtype=jnp.float32) * 0.1
    out2 = jax.block_until_ready(batchnorm_relu(x, gamma2, beta2))
    assert jnp.allclose(out2, _reference(x, gamma2, beta2), atol=1e-4, rtol=1e-4)

    # Batched path (N > 1): grid-over-N two-pass kernel, no HBM transpose.
    xb = jax.random.normal(kx2, (3, C, H, W), dtype=jnp.float32)
    outb = jax.block_until_ready(batchnorm_relu(xb, gamma2, beta2))
    assert jnp.allclose(outb, _reference(xb, gamma2, beta2), atol=1e-4, rtol=1e-4)

    print("KERNEL_OK")
</pallas_src>

<mosaic_0001>
module attributes {stable_mosaic.version = 11 : i64} {
  func.func @_bn_relu_single_kernel(%arg0: memref<24x196xf32, #tpu.memory_space<vmem>>, %arg1: memref<24x2xf32, #tpu.memory_space<vmem>>, %arg2: memref<24x196xf32, #tpu.memory_space<vmem>>) attributes {dimension_semantics = [], scalar_prefetch = 0 : i64, scratch_operands = 0 : i64, tpu.core_type = #tpu.core_type<tc>} {
    %c0 = arith.constant 0 : index
    %c0_0 = arith.constant 0 : index
    %0 = vector.load %arg0[%c0, %c0_0] : memref<24x196xf32, #tpu.memory_space<vmem>>, vector<24x196xf32>
    %cst = arith.constant dense<0.000000e+00> : vector<24xf32>
    %1 = vector.multi_reduction <add>, %0, %cst [1] : vector<24x196xf32> to vector<24xf32>
    %2 = vector.shape_cast %1 : vector<24xf32> to vector<24x1xf32>
    %3 = arith.mulf %0, %0 : vector<24x196xf32>
    %cst_1 = arith.constant dense<0.000000e+00> : vector<24xf32>
    %4 = vector.multi_reduction <add>, %3, %cst_1 [1] : vector<24x196xf32> to vector<24xf32>
    %5 = vector.shape_cast %4 : vector<24xf32> to vector<24x1xf32>
    %cst_2 = arith.constant 0.00510204071 : f32
    %6 = vector.broadcast %cst_2 : f32 to vector<24x1xf32>
    %7 = arith.mulf %2, %6 : vector<24x1xf32>
    %cst_3 = arith.constant 0.00510204071 : f32
    %8 = vector.broadcast %cst_3 : f32 to vector<24x1xf32>
    %9 = arith.mulf %5, %8 : vector<24x1xf32>
    %10 = arith.mulf %7, %7 : vector<24x1xf32>
    %11 = arith.subf %9, %10 : vector<24x1xf32>
    %cst_4 = arith.constant 1.000000e-03 : f32
    %12 = vector.broadcast %cst_4 : f32 to vector<24x1xf32>
    %13 = arith.addf %11, %12 : vector<24x1xf32>
    %14 = math.rsqrt %13 : vector<24x1xf32>
    %c0_5 = arith.constant 0 : index
    %c0_6 = arith.constant 0 : index
    %15 = vector.load %arg1[%c0_5, %c0_6] : memref<24x2xf32, #tpu.memory_space<vmem>>, vector<24x2xf32>
    %16 = vector.extract_strided_slice %15 {offsets = [0, 0], sizes = [24, 1], strides = [1, 1]} : vector<24x2xf32> to vector<24x1xf32>
    %17 = arith.mulf %14, %16 : vector<24x1xf32>
    %18 = vector.extract_strided_slice %15 {offsets = [0, 1], sizes = [24, 1], strides = [1, 1]} : vector<24x2xf32> to vector<24x1xf32>
    %19 = arith.mulf %7, %17 : vector<24x1xf32>
    %20 = arith.subf %18, %19 : vector<24x1xf32>
    %21 = vector.broadcast %17 : vector<24x1xf32> to vector<24x196xf32>
    %22 = arith.mulf %0, %21 : vector<24x196xf32>
    %23 = vector.broadcast %20 : vector<24x1xf32> to vector<24x196xf32>
    %24 = arith.addf %22, %23 : vector<24x196xf32>
    %cst_7 = arith.constant 0.000000e+00 : f32
    %25 = vector.broadcast %cst_7 : f32 to vector<24x196xf32>
    %26 = arith.maximumf %24, %25 : vector<24x196xf32>
    %c0_8 = arith.constant 0 : index
    %c0_9 = arith.constant 0 : index
    %27 = vector.load %arg2[%c0_8, %c0_9] : memref<24x196xf32, #tpu.memory_space<vmem>>, vector<24x196xf32>
    tpu.vector_store %arg2[%c0_8, %c0_9], %26 {strides = array<i32>} : memref<24x196xf32, #tpu.memory_space<vmem>>, vector<24x196xf32>,
    return
  }
}

</mosaic_0001>

<llo_original>
// kernel: tpu_custom_call.1
$region0: #{tpu_custom_call.1}
  #allocation0 [shape = 'u32[]', space=smem, size = 0x4, offset = 0x4, fixed_abs, tag = 'smem constant byte address 0x4 - core index']
  #allocation1 [shape = 'u32[72,128]{1,0:T(1,128)}', space=vmem, size = 0x9000, scoped, tag = 'internal scratch']
  %s0 = inlined_call_operand.hbm [shape: f32[24,196], index: 0, kind: input, shape index: {}]
  %s1 = inlined_call_operand.vmem [shape: f32[24,2], index: 1, kind: input, shape index: {}]
  %s2 = inlined_call_operand.hbm [shape: f32[24,196], index: 2, kind: output, shape index: {}]
  %s3 = sld [smem:[#allocation0]]
  $region22: #{tpu_custom_call.1} parent=0
    _
  %s5 = ssub.s32 1, %s3
  %s6 = scalar_select 0, %s5, %s3
  $region1: #{tpu_custom_call.1} parent=0
    #allocation2 [shape = 'u8[24576]{0}', space=vmem, size = 0x6000, scoped, tag = 'input window, operand 0, single buffered']
    #allocation3 [shape = 's32[1]{0}', space=sflag, size = 0x4, scoped, tag = 'scoped memory for tpu_custom_call.1']
    #allocation4 [shape = 's32[1]{0}', space=sflag, size = 0x4, scoped, tag = 'scoped memory for tpu_custom_call.1']
    #allocation5 [shape = 'u8[24576]{0}', space=vmem, size = 0x6000, scoped, tag = 'output window, operand 0, single buffered']
    %7 = vsyncpa [#allocation3], 0
    %8 = vsyncpa [#allocation4], 0
    // Predicated region
    $region2: #{tpu_custom_call.1} parent=1 // pred_check
      _
    $region3: #{tpu_custom_call.1} parent=1 // pred_check_branch
      %10 = sbr.rel (0) target = $region5
    $region4: #{tpu_custom_call.1} parent=1 // pred_region
      %12 = vsyncadd [#allocation3], 0
      %s13 = sshll.u32 %s0, 4
      %s14 = int_to_ptr.hbm [resolvable:$true] %s13
      %s15 = sshll.u32 [#allocation2], 4
      %s16 = int_to_ptr.vmem [resolvable:$true] %s15
      %21 = dma.hbm_to_vmem [thread:$0]  %s14, 768, %s16, [#allocation3], 256, 256, 16
    $region5: #{tpu_custom_call.1} parent=1 // pred_fallthru
      _
    // Predicated region
    $region6: #{tpu_custom_call.1} parent=1 // pred_check
      _
    $region7: #{tpu_custom_call.1} parent=1 // pred_check_branch
      %23 = sbr.rel (0) target = $region9
    $region8: #{tpu_custom_call.1} parent=1 // pred_region
      _
    $region9: #{tpu_custom_call.1} parent=1 // pred_fallthru
      _
    // Predicated region
    $region10: #{tpu_custom_call.1} parent=1 // pred_check
      _
    $region11: #{tpu_custom_call.1} parent=1 // pred_check_branch
      %25 = sbr.rel (0) target = $region13
    $region12: #{tpu_custom_call.1} parent=1 // pred_region
      %27 = dma.done [#allocation3], 768
    $region13: #{tpu_custom_call.1} parent=1 // pred_fallthru
      _
    %v28 = vld [vmem:[#allocation2] sm:$0xff]
    %v29 = vld [vmem:[#allocation2 + $0x8] sm:$0xff]
    %v30 = vld [vmem:[#allocation2 + $0x10] sm:$0xff]
    %v31 = vld [vmem:[#allocation2 + $0x18] sm:$0xff]
    %v32 = vld [vmem:[#allocation2 + $0x20] sm:$0xff]
    %v33 = vld [vmem:[#allocation2 + $0x28] sm:$0xff]
    %vm34 = vcmask 556032
    %v35 = vsel %vm34, %v29, 0.0
    %v36 = vadd.f32 %v28, %v35
    %37 = vadd.xlane.f32.xlu0 %v36
    %v38 = vpop.xlane.xlu0 %37
    %v39 = vsel %vm34, %v31, 0.0
    %v40 = vadd.f32 %v30, %v39
    %41 = vadd.xlane.f32.xlu0 %v40
    %v42 = vpop.xlane.xlu0 %41
    %v43 = vsel %vm34, %v33, 0.0
    %v44 = vadd.f32 %v32, %v43
    %45 = vadd.xlane.f32.xlu0 %v44
    %v46 = vpop.xlane.xlu0 %45
    %v47 = vmul.f32 %v28, %v28
    %v48 = vmul.f32 %v29, %v29
    %v49 = vmul.f32 %v30, %v30
    %v50 = vmul.f32 %v31, %v31
    %v51 = vmul.f32 %v32, %v32
    %v52 = vmul.f32 %v33, %v33
    %v53 = vsel %vm34, %v48, 0.0
    %v54 = vadd.f32 %v47, %v53
    %55 = vadd.xlane.f32.xlu0 %v54
    %v56 = vpop.xlane.xlu0 %55
    %v57 = vsel %vm34, %v50, 0.0
    %v58 = vadd.f32 %v49, %v57
    %59 = vadd.xlane.f32.xlu0 %v58
    %v60 = vpop.xlane.xlu0 %59
    %v61 = vsel %vm34, %v52, 0.0
    %v62 = vadd.f32 %v51, %v61
    %63 = vadd.xlane.f32.xlu0 %v62
    %v64 = vpop.xlane.xlu0 %63
    %v65 = vmul.f32 %v38, 0.0051020407
    %v66 = vmul.f32 %v42, 0.0051020407
    %v67 = vmul.f32 %v46, 0.0051020407
    %v68 = vmul.f32 %v56, 0.0051020407
    %v69 = vmul.f32 %v60, 0.0051020407
    %v70 = vmul.f32 %v64, 0.0051020407
    %v71 = vmul.f32 %v65, %v65
    %v72 = vmul.f32 %v66, %v66
    %v73 = vmul.f32 %v67, %v67
    %v74 = vsub.f32 %v68, %v71
    %v75 = vsub.f32 %v69, %v72
    %v76 = vsub.f32 %v70, %v73
    %v77 = vadd.f32 %v74, 0.001
    %v78 = vadd.f32 %v75, 0.001
    %v79 = vadd.f32 %v76, 0.001
    %v80 = vrsqrt.pop %v77
    %v81 = vmul.f32 %v80, %v77
    %v82 = vmul.f32 %v81, %v80
    %v83 = vmul.f32 0.5, %v82
    %v84 = vsub.f32 1.5, %v83
    %v85 = vmul.f32 %v80, %v84
    %vm86 = vweird.f32 %v77
    %vm87 = vweird.f32 %v80
    %vm88 = vmor %vm86, %vm87
    %v89 = vsel %vm88, %v80, %v85
    %v90 = vrsqrt.pop %v78
    %v91 = vmul.f32 %v90, %v78
    %v92 = vmul.f32 %v91, %v90
    %v93 = vmul.f32 0.5, %v92
    %v94 = vsub.f32 1.5, %v93
    %v95 = vmul.f32 %v90, %v94
    %vm96 = vweird.f32 %v78
    %vm97 = vweird.f32 %v90
    %vm98 = vmor %vm96, %vm97
    %v99 = vsel %vm98, %v90, %v95
    %v100 = vrsqrt.pop %v79
    %v101 = vmul.f32 %v100, %v79
    %v102 = vmul.f32 %v101, %v100
    %v103 = vmul.f32 0.5, %v102
    %v104 = vsub.f32 1.5, %v103
    %v105 = vmul.f32 %v100, %v104
    %vm106 = vweird.f32 %v79
    %vm107 = vweird.f32 %v100
    %vm108 = vmor %vm106, %vm107
    %v109 = vsel %vm108, %v100, %v105
    %v110 = vld [vmem:[%s1] sm:$0xff]
    %v111 = vld [vmem:[%s1 + $0x8] sm:$0xff]
    %v112 = vld [vmem:[%s1 + $0x10] sm:$0xff]
    %v113 = vmul.f32 %v89, %v110
    %v114 = vmul.f32 %v99, %v111
    %v115 = vmul.f32 %v109, %v112
    %v116 = vmul.f32 %v65, %v113
    %v117 = vmul.f32 %v66, %v114
    %v118 = vmul.f32 %v67, %v115
    %122 = vrot.lane.b32.xlu0 %v116, 1
    %v123 = vpop.permute.xlu0 %122
    %124 = vrot.lane.b32.xlu0 %v117, 1
    %v125 = vpop.permute.xlu0 %124
    %126 = vrot.lane.b32.xlu0 %v118, 1
    %v127 = vpop.permute.xlu0 %126
    %v131 = vsub.f32 %v110, %v123
    %v132 = vsub.f32 %v111, %v125
    %v133 = vsub.f32 %v112, %v127
    %135 = vset.pattern.permute.xlu0 0
    %136 = vperm.xlu0 %135, %v113
    %v137 = vpop.permute.xlu0 %136
    %140 = vset.pattern.permute.xlu0 0
    %141 = vperm.xlu0 %140, %v114
    %v142 = vpop.permute.xlu0 %141
    %145 = vset.pattern.permute.xlu0 0
    %146 = vperm.xlu0 %145, %v115
    %v147 = vpop.permute.xlu0 %146
    %v149 = vmul.f32 %v28, %v137
    %v150 = vmul.f32 %v29, %v137
    %v151 = vmul.f32 %v30, %v142
    %v152 = vmul.f32 %v31, %v142
    %v153 = vmul.f32 %v32, %v147
    %v154 = vmul.f32 %v33, %v147
    %156 = vset.pattern.permute.xlu0 1
    %157 = vperm.xlu0 %156, %v131
    %v158 = vpop.permute.xlu0 %157
    %161 = vset.pattern.permute.xlu0 1
    %162 = vperm.xlu0 %161, %v132
    %v163 = vpop.permute.xlu0 %162
    %166 = vset.pattern.permute.xlu0 1
    %167 = vperm.xlu0 %166, %v133
    %v168 = vpop.permute.xlu0 %167
    %v170 = vadd.f32 %v149, %v158
    %v171 = vadd.f32 %v150, %v158
    %v172 = vadd.f32 %v151, %v163
    %v173 = vadd.f32 %v152, %v163
    %v174 = vadd.f32 %v153, %v168
    %v175 = vadd.f32 %v154, %v168
    %v176 = vmax.f32 %v170, 0.0
    %v177 = vmax.f32 %v171, 0.0
    %v178 = vmax.f32 %v172, 0.0
    %v179 = vmax.f32 %v173, 0.0
    %v180 = vmax.f32 %v174, 0.0
    %v181 = vmax.f32 %v175, 0.0
    %182 = vst [vmem:[#allocation5] sm:$0xff] %v176
    %183 = vst.msk [vmem:[#allocation5 + $0x8] sm:$0xff] %vm34, %v177
    %184 = vst [vmem:[#allocation5 + $0x10] sm:$0xff] %v178
    %185 = vst.msk [vmem:[#allocation5 + $0x18] sm:$0xff] %vm34, %v179
    %186 = vst [vmem:[#allocation5 + $0x20] sm:$0xff] %v180
    %187 = vst.msk [vmem:[#allocation5 + $0x28] sm:$0xff] %vm34, %v181
    // Predicated region
    $region14: #{tpu_custom_call.1} parent=1 // pred_check
      _
    $region15: #{tpu_custom_call.1} parent=1 // pred_check_branch
      %189 = sbr.rel (0) target = $region17
    $region16: #{tpu_custom_call.1} parent=1 // pred_region
      %191 = vsyncadd [#allocation4], 0
      %s192 = sshll.u32 [#allocation5], 4
      %s193 = int_to_ptr.vmem [resolvable:$true] %s192
      %s194 = sshll.u32 %s2, 4
      %s195 = int_to_ptr.hbm [resolvable:$true] %s194
      %200 = dma.vmem_to_hbm [thread:$0]  %s193, 768, %s195, [#allocation4], 256, 256, 16
    $region17: #{tpu_custom_call.1} parent=1 // pred_fallthru
      _
    // Predicated region
    $region18: #{tpu_custom_call.1} parent=1 // pred_check
      _
    $region19: #{tpu_custom_call.1} parent=1 // pred_check_branch
      %202 = sbr.rel (0) target = $region21
    $region20: #{tpu_custom_call.1} parent=1 // pred_region
      %204 = dma.done [#allocation4], 768
    $region21: #{tpu_custom_call.1} parent=1 // pred_fallthru
      _
    %205 = vsyncpa [#allocation3], 1
    %206 = vsyncpa [#allocation4], 1

</llo_original>
